<compile_context>
chip_gen: v7x
topology: tpu7x:2x2x1
jax: 0.10.0
libtpu: 0.0.40
codegen_flags: <defaults>
</compile_context>

<pallas_src>
import jax
import jax.numpy as jnp
from jax import lax
from jax.experimental import pallas as pl
from jax.experimental.pallas import tpu as pltpu


_VMEM_BUDGET_BYTES = 24 * 1024 * 1024   # conservative: fits v7x (64 MiB) too


def _round_up(x: int, m: int) -> int:
    return ((x + m - 1) // m) * m


def _vmem_estimate(TB, TV, H_pad, C_pad, N_pad):
    """Rough resident-VMEM estimate (double-buffered inputs/outputs + scratch)."""
    bf2, f4 = 2, 4
    return (2 * TV * H_pad * bf2          # emb tile (bf16, double buffered)
            + 2 * H_pad * C_pad * bf2     # W (bf16)
            + 2 * TB * N_pad * bf2        # Seg indicator (bf16)
            + 2 * N_pad * 1 * f4          # token ids
            + 2 * TB * 1 * f4             # 1/len
            + 2 * 1 * C_pad * f4          # bias
            + 2 * TB * C_pad * f4         # output tile
            + TB * H_pad * f4             # h_acc scratch
            + 2 * N_pad * TV * bf2)       # one-hot temporary (headroom)


def mlp_kernel(hits_ref, nhit_ref, seg_ref, tok_id_ref, invlen_ref,
               emb_ref, w_ref, b_ref, out_ref, h_acc):
    """Grid: (B_pad // TB, max_hit).  Axis 1 is the vocab-tile reduction (last).

    hits_ref   : [max_hit] int32 (SMEM)  vocab-tile index streamed at step j
    nhit_ref   : [1]       int32 (SMEM)  number of valid hit tiles
    seg_ref    : [TB, N_pad]  bf16   0/1 bag-membership indicator (batch tile)
    tok_id_ref : [N_pad, 1]   int32  token id per token (-1 = padding)
    invlen_ref : [TB, 1]      f32    1/len(bag) per bag row
    emb_ref    : [TV, H_pad]  bf16   embedding-table tile (hit tiles only)
    w_ref      : [H_pad, C_pad] bf16 final Linear weight (transposed, padded)
    b_ref      : [1, C_pad]   f32    final Linear bias (padded)
    out_ref    : [TB, C_pad]  f32    logits tile (resident across axis 1)
    h_acc      : [TB, H_pad]  f32    VMEM accumulator (sum of embeddings)
    """
    j = pl.program_id(1)
    TV = emb_ref.shape[0]
    N_pad = tok_id_ref.shape[0]

    @pl.when(j == 0)
    def _():
        h_acc[...] = jnp.zeros_like(h_acc)

    @pl.when(j < nhit_ref[0])
    def _():
        v_base = hits_ref[j] * TV
        # OneHot[t, v] = (token t's id == v_base + v); padded ids (-1) match none.
        col_iota = lax.broadcasted_iota(jnp.int32, (N_pad, TV), 1) + v_base
        onehot = (tok_id_ref[...] == col_iota).astype(jnp.bfloat16)
        # counts[b, v] = #occurrences of vocab column v in bag b (exact small ints)
        counts = jnp.dot(seg_ref[...], onehot,
                         preferred_element_type=jnp.float32)            # [TB, TV]
        h_acc[...] += jnp.dot(counts.astype(jnp.bfloat16), emb_ref[...],
                              preferred_element_type=jnp.float32)       # [TB, H]

    @pl.when(j == pl.num_programs(1) - 1)
    def _():
        # mean = sum * (1/len); relu commutes with the positive scale.
        # embedding_dropout / dropout are identity in eval mode.
        h = jnp.maximum(h_acc[...], 0.0) * invlen_ref[...]
        out_ref[...] = (
            jnp.dot(h.astype(jnp.bfloat16), w_ref[...],
                    preferred_element_type=jnp.float32)
            + b_ref[...])


def mlp_forward(input_ids, offsets_ext, emb_table, w, bias,
                *, tile_b=128, tile_v=512):
    """input_ids [N] int32, offsets_ext [B+1] int32 (last entry == N),
    emb_table [V, H] f32, w [H, C] f32 (transposed PyTorch weight), bias [C]."""
    N = int(input_ids.shape[0])
    B = int(offsets_ext.shape[0]) - 1
    V, H = emb_table.shape
    _, C = w.shape

    # ---- tiling / padding ----------------------------------------------------
    H_pad = _round_up(H, 128)
    C_pad = _round_up(C, 128)        # lane-dense output / weight / bias
    N_pad = _round_up(max(N, 1), 256)

    B8 = _round_up(max(B, 1), 8)
    if B8 <= tile_b:
        # >=2 batch tiles when possible so v7x's 2 TensorCores both get work.
        TB = B8 if B8 < 16 else _round_up((B8 + 1) // 2, 8)
    else:
        TB = tile_b
    B_pad = _round_up(B8, TB)

    TV = min(tile_v, _round_up(V, 8))
    while TV > 64 and _vmem_estimate(TB, TV, H_pad, C_pad, N_pad) > _VMEM_BUDGET_BYTES:
        TV = max(64, TV // 2)
    V_pad = _round_up(V, TV)
    num_v_tiles = V_pad // TV
    max_hit = max(1, min(num_v_tiles, max(N, 1)))

    # ---- per-token COO data (bag index, 1/len weight) in plain JAX ------------
    offsets_i = offsets_ext.astype(jnp.int32)
    t = jnp.arange(N, dtype=jnp.int32)
    tok_bag = jnp.searchsorted(offsets_i, t, side='right').astype(jnp.int32) - 1
    lengths = (offsets_i[1:] - offsets_i[:-1]).astype(jnp.float32)
    inv_len_b = 1.0 / jnp.maximum(lengths, 1.0)                       # [B]

    tok_bag_row = jnp.full((N_pad,), -1, jnp.int32)
    tok_id_col = jnp.full((N_pad, 1), -1, jnp.int32)
    if N > 0:
        tok_bag_row = tok_bag_row.at[:N].set(tok_bag)
        tok_id_col = tok_id_col.at[:N, 0].set(input_ids.astype(jnp.int32))

    # Bag-membership indicator (hoisted out of the vocab reduction), bf16 exact 0/1.
    seg_ind = (tok_bag_row[None, :] ==
               jnp.arange(B_pad, dtype=jnp.int32)[:, None]).astype(jnp.bfloat16)

    inv_len = jnp.ones((B_pad, 1), jnp.float32)
    if B > 0:
        inv_len = inv_len.at[:B, 0].set(inv_len_b)

    # ---- parameters (bf16 MXU inputs, f32 accumulation in-kernel) -------------
    emb_p = jnp.zeros((V_pad, H_pad), jnp.bfloat16).at[:V, :H].set(
        emb_table.astype(jnp.bfloat16))
    w_p = jnp.zeros((H_pad, C_pad), jnp.bfloat16).at[:H, :C].set(
        w.astype(jnp.bfloat16))
    b_p = jnp.zeros((1, C_pad), jnp.float32).at[0, :C].set(
        bias.astype(jnp.float32))

    # ---- vocab-tile hit list (scalar prefetch): stream only touched tiles -----
    if N > 0:
        tile_ids = jnp.clip(input_ids.astype(jnp.int32) // TV, 0, num_v_tiles - 1)
        uniq = jnp.unique(tile_ids, size=max_hit, fill_value=-1)
        n_hit = jnp.sum(uniq >= 0).astype(jnp.int32)
        last_hit = jnp.maximum(uniq[jnp.maximum(n_hit - 1, 0)], 0)
        hits = jnp.where(uniq >= 0, uniq, last_hit).astype(jnp.int32)
    else:
        hits = jnp.zeros((max_hit,), jnp.int32)
        n_hit = jnp.zeros((), jnp.int32)
    nhit_arr = jnp.reshape(n_hit, (1,)).astype(jnp.int32)

    grid = (B_pad // TB, max_hit)

    est = _vmem_estimate(TB, TV, H_pad, C_pad, N_pad)
    vmem_limit = int(min(max(2 * est, 32 * 1024 * 1024), 56 * 1024 * 1024))

    out_p = pl.pallas_call(
        mlp_kernel,
        out_shape=jax.ShapeDtypeStruct((B_pad, C_pad), jnp.float32),
        grid_spec=pltpu.PrefetchScalarGridSpec(
            num_scalar_prefetch=2,
            grid=grid,
            in_specs=[
                pl.BlockSpec((TB, N_pad), lambda i, j, hits, nh: (i, 0)),      # Seg
                pl.BlockSpec((N_pad, 1), lambda i, j, hits, nh: (0, 0)),       # ids
                pl.BlockSpec((TB, 1), lambda i, j, hits, nh: (i, 0)),          # 1/len
                pl.BlockSpec((TV, H_pad), lambda i, j, hits, nh: (hits[j], 0)),  # emb
                pl.BlockSpec((H_pad, C_pad), lambda i, j, hits, nh: (0, 0)),   # W
                pl.BlockSpec((1, C_pad), lambda i, j, hits, nh: (0, 0)),       # bias
            ],
            out_specs=pl.BlockSpec((TB, C_pad), lambda i, j, hits, nh: (i, 0)),
            scratch_shapes=[pltpu.VMEM((TB, H_pad), jnp.float32)],
        ),
        compiler_params=pltpu.CompilerParams(
            dimension_semantics=("parallel", "arbitrary"),
            vmem_limit_bytes=vmem_limit),
    )(hits, nhit_arr, seg_ind, tok_id_col, inv_len, emb_p, w_p, b_p)

    return out_p[:B, :C]


def reference_forward(input_ids, offsets_ext, emb_table, w, bias):
    """Pure-JAX (f32) reference matching the PyTorch eval-mode forward."""
    B = offsets_ext.shape[0] - 1
    rows = []
    for i in range(B):
        s, e = int(offsets_ext[i]), int(offsets_ext[i + 1])
        if e > s:
            rows.append(emb_table[input_ids[s:e]].mean(axis=0))
        else:
            rows.append(jnp.zeros((emb_table.shape[1],), jnp.float32))
    h = jnp.stack(rows, axis=0)
    h = jnp.maximum(h, 0.0)
    return h @ w + bias[None, :]


if __name__ == "__main__":
    # Small, deterministic problem (module defaults: mean-mode EmbeddingBag,
    # relu, one final Linear).
    vocab_size = 64
    hidden_size = 128
    num_classes = 16
    batch = 8

    key = jax.random.PRNGKey(0)
    k_emb, k_w, k_b, k_ids, k_len = jax.random.split(key, 5)

    emb_table = jax.random.normal(k_emb, (vocab_size, hidden_size), jnp.float32)
    w = jax.random.uniform(k_w, (hidden_size, num_classes), jnp.float32,
                           minval=-0.05, maxval=0.05)
    bias = jax.random.uniform(k_b, (num_classes,), jnp.float32,
                              minval=-0.05, maxval=0.05)

    # Bags of variable length (2..5 tokens each).
    lengths = jax.random.randint(k_len, (batch,), 2, 6)
    offsets = jnp.concatenate(
        [jnp.zeros((1,), jnp.int32), jnp.cumsum(lengths).astype(jnp.int32)])
    n_tokens = int(offsets[-1])
    input_ids = jax.random.randint(k_ids, (n_tokens,), 0, vocab_size,
                                   dtype=jnp.int32)

    logits = mlp_forward(input_ids, offsets, emb_table, w, bias)
    logits = jax.block_until_ready(logits)

    ref = reference_forward(input_ids, offsets, emb_table, w, bias)
    assert logits.shape == (batch, num_classes)
    # bf16 MXU inputs with f32 accumulation: expect ~1e-3 absolute error vs the
    # full-f32 reference at these magnitudes.
    assert jnp.allclose(logits, ref, atol=2e-2, rtol=2e-2)

    print("KERNEL_OK")
</pallas_src>

<mosaic_0001>
module attributes {stable_mosaic.version = 11 : i64} {
  func.func @mlp_kernel(%arg0: i32, %arg1: i32, %arg2: memref<1xi32, #tpu.memory_space<smem>>, %arg3: memref<1xi32, #tpu.memory_space<smem>>, %arg4: memref<8x256xbf16, #tpu.memory_space<vmem>>, %arg5: memref<256x1xi32, #tpu.memory_space<vmem>>, %arg6: memref<8x1xf32, #tpu.memory_space<vmem>>, %arg7: memref<64x128xbf16, #tpu.memory_space<vmem>>, %arg8: memref<128x128xbf16, #tpu.memory_space<vmem>>, %arg9: memref<1x128xf32, #tpu.memory_space<vmem>>, %arg10: memref<8x128xf32, #tpu.memory_space<vmem>>, %arg11: memref<8x128xf32, #tpu.memory_space<vmem>>) attributes {dimension_semantics = [#tpu.dimension_semantics<parallel>, #tpu.dimension_semantics<arbitrary>], iteration_bounds = array<i64: 1, 1>, scalar_prefetch = 2 : i64, scratch_operands = 1 : i64, tpu.core_type = #tpu.core_type<tc>, window_params = [{transform_indices = @transform_0, window_bounds = array<i64: 8, 256>}, {pipeline_mode = #tpu.pipeline_mode<synchronous>, transform_indices = @transform_1, window_bounds = array<i64: 256, 1>}, {transform_indices = @transform_2, window_bounds = array<i64: 8, 1>}, {transform_indices = @transform_3, window_bounds = array<i64: 64, 128>}, {pipeline_mode = #tpu.pipeline_mode<synchronous>, transform_indices = @transform_4, window_bounds = array<i64: 128, 128>}, {pipeline_mode = #tpu.pipeline_mode<synchronous>, transform_indices = @transform_5, window_bounds = array<i64: 1, 128>}, {transform_indices = @transform_6, window_bounds = array<i64: 8, 128>}]} {
    %c0_i32 = arith.constant 0 : i32
    %0 = arith.cmpi eq, %arg1, %c0_i32 : i32
    %1 = arith.extui %0 : i1 to i32
    %c0_i32_0 = arith.constant 0 : i32
    %2 = arith.cmpi ne, %1, %c0_i32_0 : i32
    scf.if %2 {
      %cst = arith.constant 0.000000e+00 : f32
      %10 = vector.broadcast %cst : f32 to vector<8x128xf32>
      %c0_4 = arith.constant 0 : index
      %c0_5 = arith.constant 0 : index
      %11 = vector.load %arg11[%c0_4, %c0_5] : memref<8x128xf32, #tpu.memory_space<vmem>>, vector<8x128xf32>
      tpu.vector_store %arg11[%c0_4, %c0_5], %10 {strides = array<i32>} : memref<8x128xf32, #tpu.memory_space<vmem>>, vector<8x128xf32>,
    } else {
    }
    %c0 = arith.constant 0 : index
    %3 = memref.load %arg3[%c0] : memref<1xi32, #tpu.memory_space<smem>>
    %4 = arith.cmpi slt, %arg1, %3 : i32
    %5 = arith.extui %4 : i1 to i32
    %c0_i32_1 = arith.constant 0 : i32
    %6 = arith.cmpi ne, %5, %c0_i32_1 : i32
    scf.if %6 {
      %10 = arith.index_cast %arg1 : i32 to index
      %11 = memref.load %arg2[%10] : memref<1xi32, #tpu.memory_space<smem>>
      %c64_i32 = arith.constant 64 : i32
      %12 = arith.muli %11, %c64_i32 : i32
      %13 = tpu.iota {dimensions = array<i32: 1>} : vector<256x64xi32>
      %14 = vector.broadcast %12 : i32 to vector<256x64xi32>
      %15 = arith.addi %13, %14 : vector<256x64xi32>
      %c0_4 = arith.constant 0 : index
      %c0_5 = arith.constant 0 : index
      %16 = vector.load %arg5[%c0_4, %c0_5] : memref<256x1xi32, #tpu.memory_space<vmem>>, vector<256x1xi32>
      %17 = vector.broadcast %16 : vector<256x1xi32> to vector<256x64xi32>
      %18 = arith.cmpi eq, %17, %15 : vector<256x64xi32>
      %19 = arith.extui %18 : vector<256x64xi1> to vector<256x64xi32>
      %20 = arith.sitofp %19 : vector<256x64xi32> to vector<256x64xf32>
      %21 = arith.truncf %20 : vector<256x64xf32> to vector<256x64xbf16>
      %c0_6 = arith.constant 0 : index
      %c0_7 = arith.constant 0 : index
      %22 = vector.load %arg4[%c0_6, %c0_7] : memref<8x256xbf16, #tpu.memory_space<vmem>>, vector<8x256xbf16>
      %cst = arith.constant dense<0.000000e+00> : vector<8x64xf32>
      %23 = tpu.matmul %22, %21, %cst {dimension_numbers = #tpu.dot_dimension_numbers<[1], [0], [0], [1], [0, 0, 1, 1], [], []>} : vector<8x256xbf16>, vector<256x64xbf16>, vector<8x64xf32> -> vector<8x64xf32>
      %c0_8 = arith.constant 0 : index
      %c0_9 = arith.constant 0 : index
      %24 = vector.load %arg11[%c0_8, %c0_9] : memref<8x128xf32, #tpu.memory_space<vmem>>, vector<8x128xf32>
      %25 = arith.truncf %23 : vector<8x64xf32> to vector<8x64xbf16>
      %c0_10 = arith.constant 0 : index
      %c0_11 = arith.constant 0 : index
      %26 = vector.load %arg7[%c0_10, %c0_11] : memref<64x128xbf16, #tpu.memory_space<vmem>>, vector<64x128xbf16>
      %cst_12 = arith.constant dense<0.000000e+00> : vector<8x128xf32>
      %27 = tpu.matmul %25, %26, %cst_12 {dimension_numbers = #tpu.dot_dimension_numbers<[1], [0], [0], [1], [0, 0, 1, 1], [], []>} : vector<8x64xbf16>, vector<64x128xbf16>, vector<8x128xf32> -> vector<8x128xf32>
      %28 = arith.addf %24, %27 : vector<8x128xf32>
      %c0_13 = arith.constant 0 : index
      %c0_14 = arith.constant 0 : index
      %29 = vector.load %arg11[%c0_13, %c0_14] : memref<8x128xf32, #tpu.memory_space<vmem>>, vector<8x128xf32>
      tpu.vector_store %arg11[%c0_13, %c0_14], %28 {strides = array<i32>} : memref<8x128xf32, #tpu.memory_space<vmem>>, vector<8x128xf32>,
    } else {
    }
    %c0_i32_2 = arith.constant 0 : i32
    %7 = arith.cmpi eq, %arg1, %c0_i32_2 : i32
    %8 = arith.extui %7 : i1 to i32
    %c0_i32_3 = arith.constant 0 : i32
    %9 = arith.cmpi ne, %8, %c0_i32_3 : i32
    scf.if %9 {
      %c0_4 = arith.constant 0 : index
      %c0_5 = arith.constant 0 : index
      %10 = vector.load %arg11[%c0_4, %c0_5] : memref<8x128xf32, #tpu.memory_space<vmem>>, vector<8x128xf32>
      %cst = arith.constant 0.000000e+00 : f32
      %11 = vector.broadcast %cst : f32 to vector<8x128xf32>
      %12 = arith.maximumf %10, %11 : vector<8x128xf32>
      %c0_6 = arith.constant 0 : index
      %c0_7 = arith.constant 0 : index
      %13 = vector.load %arg6[%c0_6, %c0_7] : memref<8x1xf32, #tpu.memory_space<vmem>>, vector<8x1xf32>
      %14 = vector.broadcast %13 : vector<8x1xf32> to vector<8x128xf32>
      %15 = arith.mulf %12, %14 : vector<8x128xf32>
      %16 = arith.truncf %15 : vector<8x128xf32> to vector<8x128xbf16>
      %c0_8 = arith.constant 0 : index
      %c0_9 = arith.constant 0 : index
      %17 = vector.load %arg8[%c0_8, %c0_9] : memref<128x128xbf16, #tpu.memory_space<vmem>>, vector<128x128xbf16>
      %cst_10 = arith.constant dense<0.000000e+00> : vector<8x128xf32>
      %18 = tpu.matmul %16, %17, %cst_10 {dimension_numbers = #tpu.dot_dimension_numbers<[1], [0], [0], [1], [0, 0, 1, 1], [], []>} : vector<8x128xbf16>, vector<128x128xbf16>, vector<8x128xf32> -> vector<8x128xf32>
      %c0_11 = arith.constant 0 : index
      %c0_12 = arith.constant 0 : index
      %19 = vector.load %arg9[%c0_11, %c0_12] : memref<1x128xf32, #tpu.memory_space<vmem>>, vector<1x128xf32>
      %20 = vector.broadcast %19 : vector<1x128xf32> to vector<8x128xf32>
      %21 = arith.addf %18, %20 : vector<8x128xf32>
      %c0_13 = arith.constant 0 : index
      %c0_14 = arith.constant 0 : index
      %22 = vector.load %arg10[%c0_13, %c0_14] : memref<8x128xf32, #tpu.memory_space<vmem>>, vector<8x128xf32>
      tpu.vector_store %arg10[%c0_13, %c0_14], %21 {strides = array<i32>} : memref<8x128xf32, #tpu.memory_space<vmem>>, vector<8x128xf32>,
    } else {
    }
    return
  }
  func.func @transform_0(%arg0: i32, %arg1: i32, %arg2: memref<1xi32, #tpu.memory_space<smem>>, %arg3: memref<1xi32, #tpu.memory_space<smem>>) -> (i32, i32) {
    %c0_i32 = arith.constant 0 : i32
    %c0_i32_0 = arith.constant 0 : i32
    return %arg0, %c0_i32 : i32, i32
  }
  func.func @transform_1(%arg0: i32, %arg1: i32, %arg2: memref<1xi32, #tpu.memory_space<smem>>, %arg3: memref<1xi32, #tpu.memory_space<smem>>) -> (i32, i32) {
    %c0_i32 = arith.constant 0 : i32
    %c0_i32_0 = arith.constant 0 : i32
    %c0_i32_1 = arith.constant 0 : i32
    return %c0_i32, %c0_i32_0 : i32, i32
  }
  func.func @transform_2(%arg0: i32, %arg1: i32, %arg2: memref<1xi32, #tpu.memory_space<smem>>, %arg3: memref<1xi32, #tpu.memory_space<smem>>) -> (i32, i32) {
    %c0_i32 = arith.constant 0 : i32
    %c0_i32_0 = arith.constant 0 : i32
    return %arg0, %c0_i32 : i32, i32
  }
  func.func @transform_3(%arg0: i32, %arg1: i32, %arg2: memref<1xi32, #tpu.memory_space<smem>>, %arg3: memref<1xi32, #tpu.memory_space<smem>>) -> (i32, i32) {
    %0 = arith.index_cast %arg1 : i32 to index
    %1 = memref.load %arg2[%0] : memref<1xi32, #tpu.memory_space<smem>>
    %c0_i32 = arith.constant 0 : i32
    %c0_i32_0 = arith.constant 0 : i32
    return %1, %c0_i32 : i32, i32
  }
  func.func @transform_4(%arg0: i32, %arg1: i32, %arg2: memref<1xi32, #tpu.memory_space<smem>>, %arg3: memref<1xi32, #tpu.memory_space<smem>>) -> (i32, i32) {
    %c0_i32 = arith.constant 0 : i32
    %c0_i32_0 = arith.constant 0 : i32
    %c0_i32_1 = arith.constant 0 : i32
    return %c0_i32, %c0_i32_0 : i32, i32
  }
  func.func @transform_5(%arg0: i32, %arg1: i32, %arg2: memref<1xi32, #tpu.memory_space<smem>>, %arg3: memref<1xi32, #tpu.memory_space<smem>>) -> (i32, i32) {
    %c0_i32 = arith.constant 0 : i32
    %c0_i32_0 = arith.constant 0 : i32
    %c0_i32_1 = arith.constant 0 : i32
    return %c0_i32, %c0_i32_0 : i32, i32
  }
  func.func @transform_6(%arg0: i32, %arg1: i32, %arg2: memref<1xi32, #tpu.memory_space<smem>>, %arg3: memref<1xi32, #tpu.memory_space<smem>>) -> (i32, i32) {
    %c0_i32 = arith.constant 0 : i32
    %c0_i32_0 = arith.constant 0 : i32
    return %arg0, %c0_i32 : i32, i32
  }
}

</mosaic_0001>

<llo_original>
// kernel: tpu_custom_call.1
$region0: #{tpu_custom_call.1}
  #allocation0 [shape = 'u32[]', space=smem, size = 0x4, offset = 0x4, fixed_abs, tag = 'smem constant byte address 0x4 - core index']
  #allocation1 [shape = 'u32[144,128]{1,0:T(1,128)}', space=vmem, size = 0x12000, scoped, tag = 'internal scratch']
  #allocation2 [shape = 'f32[8,128]{1,0:T(8,128)}', space=vmem, size = 0x1000, scoped, tag = 'scratch operand']
  #allocation3 [shape = 's32[1]{0}', space=sflag, size = 0x4, scoped, tag = 'scoped memory for tpu_custom_call.1']
  #allocation4 [shape = 's32[1]{0:T(128)S(6)}', space=smem, size = 0x200, scoped, tag = 'prefetched SMEM operand 0']
  #allocation5 [shape = 's32[1]{0:T(128)S(6)}', space=smem, size = 0x200, scoped, tag = 'prefetched SMEM operand 1']
  %s0 = inlined_call_operand.<no memory space> [shape: s32[1], index: 0, kind: input, shape index: {}]
  %s1 = inlined_call_operand.<no memory space> [shape: s32[1], index: 1, kind: input, shape index: {}]
  %s2 = inlined_call_operand.vmem [shape: bf16[8,256], index: 2, kind: input, shape index: {}]
  %s3 = inlined_call_operand.vmem [shape: s32[256,1], index: 3, kind: input, shape index: {}]
  %s4 = inlined_call_operand.vmem [shape: f32[8,1], index: 4, kind: input, shape index: {}]
  %s5 = inlined_call_operand.vmem [shape: bf16[64,128], index: 5, kind: input, shape index: {}]
  %s6 = inlined_call_operand.vmem [shape: bf16[128,128], index: 6, kind: input, shape index: {}]
  %s7 = inlined_call_operand.vmem [shape: f32[1,128], index: 7, kind: input, shape index: {}]
  %s8 = inlined_call_operand.hbm [shape: f32[8,128], index: 8, kind: output, shape index: {}]
  %s9 = sld [smem:[#allocation0]]
  $region46: #{tpu_custom_call.1} parent=0
    _
  %s11 = ssub.s32 1, %s9
  %s12 = scalar_select 0, %s11, %s9
  %13 = sst [smem:[#allocation4]] %s0
  %14 = sst [smem:[#allocation5]] %s1
  $region1: #{tpu_custom_call.1} parent=0
    #allocation6 [shape = 'u8[4096]{0}', space=vmem, size = 0x1000, scoped, tag = 'output window, operand 0, single buffered']
    #allocation7 [shape = 's32[1]{0}', space=sflag, size = 0x4, scoped, tag = 'scoped memory for tpu_custom_call.1']
    %15 = vsyncpa [#allocation7], 0
    // Predicated region
    $region2: #{tpu_custom_call.1} parent=1 // pred_check
      _
    $region3: #{tpu_custom_call.1} parent=1 // pred_check_branch
      %17 = sbr.rel (0) target = $region5
    $region4: #{tpu_custom_call.1} parent=1 // pred_region
      _
    $region5: #{tpu_custom_call.1} parent=1 // pred_fallthru
      _
    // Predicated region
    $region6: #{tpu_custom_call.1} parent=1 // pred_check
      _
    $region7: #{tpu_custom_call.1} parent=1 // pred_check_branch
      %19 = sbr.rel (0) target = $region9
    $region8: #{tpu_custom_call.1} parent=1 // pred_region
      _
    $region9: #{tpu_custom_call.1} parent=1 // pred_fallthru
      _
    // Predicated region
    $region10: #{tpu_custom_call.1} parent=1 // pred_check
      _
    $region11: #{tpu_custom_call.1} parent=1 // pred_check_branch
      %21 = sbr.rel (0) target = $region13
    $region12: #{tpu_custom_call.1} parent=1 // pred_region
      _
    $region13: #{tpu_custom_call.1} parent=1 // pred_fallthru
      _
    // Predicated region
    $region14: #{tpu_custom_call.1} parent=1 // pred_check
      _
    $region15: #{tpu_custom_call.1} parent=1 // pred_check_branch
      %23 = sbr.rel (0) target = $region17
    $region16: #{tpu_custom_call.1} parent=1 // pred_region
      %s24 = sld [smem:[#allocation4]]
      %s25 = smul.u32 8, %s24
      %p26 = scmp.lt.s32.totalorder %s25, 7
      %s27 = scalar_select %p26, %s25, 7
      %s28 = smul.addr %s27, 4
      %s29 = scalar_lea.vmem %s5, %s28
      %s30 = sld [smem:[#allocation4]]
      %s31 = smul.u32 8, %s30
    $region17: #{tpu_custom_call.1} parent=1 // pred_fallthru
      _
    // Predicated region
    $region18: #{tpu_custom_call.1} parent=1 // pred_check
      _
    $region19: #{tpu_custom_call.1} parent=1 // pred_check_branch
      %33 = sbr.rel (0) target = $region21
    $region20: #{tpu_custom_call.1} parent=1 // pred_region
      _
    $region21: #{tpu_custom_call.1} parent=1 // pred_fallthru
      _
    // Predicated region
    $region22: #{tpu_custom_call.1} parent=1 // pred_check
      _
    $region23: #{tpu_custom_call.1} parent=1 // pred_check_branch
      %35 = sbr.rel (0) target = $region25
    $region24: #{tpu_custom_call.1} parent=1 // pred_region
      _
    $region25: #{tpu_custom_call.1} parent=1 // pred_fallthru
      _
    %s36 = sld [smem:[#allocation4]]
    %s37 = smul.u32 8, %s36
    %p38 = scmp.lt.s32.totalorder %s37, 7
    %s39 = scalar_select %p38, %s37, 7
    %s40 = smul.addr %s39, 4
    %s41 = scalar_lea.vmem %s5, %s40
    %s42 = sld [smem:[#allocation4]]
    %s43 = smul.u32 8, %s42
    %p44 = scmp.lt.s32.totalorder %s43, 7
    %s45 = scalar_select %p44, %s43, 7
    %s46 = smul.addr %s45, 4
    %s47 = scalar_lea.vmem %s5, %s46
    %s48 = sld [smem:[#allocation4]]
    %s49 = smul.u32 8, %s48
    %p51 = scmp.eq.s32.totalorder 0, 0
    // Predicated region
    $region26: #{tpu_custom_call.1} parent=1 // pred_check
      %p52 = pneg %p51
    $region27: #{tpu_custom_call.1} parent=1 // pred_check_branch
      %54 = sbr.rel (%p52) target = $region29
    $region28: #{tpu_custom_call.1} parent=1 // pred_region
      %55 = vst [vmem:[#allocation2] sm:$0xff] 0.0
    $region29: #{tpu_custom_call.1} parent=1 // pred_fallthru
      _
    %s56 = sld [smem:[#allocation5]]
    %p57 = scmp.lt.s32.totalorder 0, %s56
    // Predicated region
    $region30: #{tpu_custom_call.1} parent=1 // pred_check
      %p58 = pneg %p57
    $region31: #{tpu_custom_call.1} parent=1 // pred_check_branch
      %60 = sbr.rel (%p58) target = $region33
    $region32: #{tpu_custom_call.1} parent=1 // pred_region
      %s61 = sld [smem:[#allocation4]]
      %s62 = smul.u32 %s61, 64
      %v63 = vlaneseq
      %v64 = vand.u32 %v63, 127
      %v65 = vstv %s62
      %v66 = vadd.s32 %v64, %v65
      %v67 = vld [vmem:[%s3] sm:$0xff]
      %v68 = vld [vmem:[%s3 + $0x8] sm:$0xff]
      %v69 = vld [vmem:[%s3 + $0x10] sm:$0xff]
      %v70 = vld [vmem:[%s3 + $0x18] sm:$0xff]
      %v71 = vld [vmem:[%s3 + $0x20] sm:$0xff]
      %v72 = vld [vmem:[%s3 + $0x28] sm:$0xff]
      %v73 = vld [vmem:[%s3 + $0x30] sm:$0xff]
      %v74 = vld [vmem:[%s3 + $0x38] sm:$0xff]
      %v75 = vld [vmem:[%s3 + $0x40] sm:$0xff]
      %v76 = vld [vmem:[%s3 + $0x48] sm:$0xff]
      %v77 = vld [vmem:[%s3 + $0x50] sm:$0xff]
      %v78 = vld [vmem:[%s3 + $0x58] sm:$0xff]
      %v79 = vld [vmem:[%s3 + $0x60] sm:$0xff]
      %v80 = vld [vmem:[%s3 + $0x68] sm:$0xff]
      %v81 = vld [vmem:[%s3 + $0x70] sm:$0xff]
      %v82 = vld [vmem:[%s3 + $0x78] sm:$0xff]
      %v83 = vld [vmem:[%s3 + $0x80] sm:$0xff]
      %v84 = vld [vmem:[%s3 + $0x88] sm:$0xff]
      %v85 = vld [vmem:[%s3 + $0x90] sm:$0xff]
      %v86 = vld [vmem:[%s3 + $0x98] sm:$0xff]
      %v87 = vld [vmem:[%s3 + $0xa0] sm:$0xff]
      %v88 = vld [vmem:[%s3 + $0xa8] sm:$0xff]
      %v89 = vld [vmem:[%s3 + $0xb0] sm:$0xff]
      %v90 = vld [vmem:[%s3 + $0xb8] sm:$0xff]
      %v91 = vld [vmem:[%s3 + $0xc0] sm:$0xff]
      %v92 = vld [vmem:[%s3 + $0xc8] sm:$0xff]
      %v93 = vld [vmem:[%s3 + $0xd0] sm:$0xff]
      %v94 = vld [vmem:[%s3 + $0xd8] sm:$0xff]
      %v95 = vld [vmem:[%s3 + $0xe0] sm:$0xff]
      %v96 = vld [vmem:[%s3 + $0xe8] sm:$0xff]
      %v97 = vld [vmem:[%s3 + $0xf0] sm:$0xff]
      %v98 = vld [vmem:[%s3 + $0xf8] sm:$0xff]
      %99 = vset.pattern.permute.xlu0 0
      %100 = vperm.xlu0 %99, %v67
      %v101 = vpop.permute.xlu0 %100
      %102 = vset.pattern.permute.xlu0 0
      %103 = vperm.xlu0 %102, %v68
      %v104 = vpop.permute.xlu0 %103
      %105 = vset.pattern.permute.xlu0 0
      %106 = vperm.xlu0 %105, %v69
      %v107 = vpop.permute.xlu0 %106
      %108 = vset.pattern.permute.xlu0 0
      %109 = vperm.xlu0 %108, %v70
      %v110 = vpop.permute.xlu0 %109
      %111 = vset.pattern.permute.xlu0 0
      %112 = vperm.xlu0 %111, %v71
      %v113 = vpop.permute.xlu0 %112
      %114 = vset.pattern.permute.xlu0 0
      %115 = vperm.xlu0 %114, %v72
      %v116 = vpop.permute.xlu0 %115
      %117 = vset.pattern.permute.xlu0 0
      %118 = vperm.xlu0 %117, %v73
      %v119 = vpop.permute.xlu0 %118
      %120 = vset.pattern.permute.xlu0 0
      %121 = vperm.xlu0 %120, %v74
      %v122 = vpop.permute.xlu0 %121
      %123 = vset.pattern.permute.xlu0 0
      %124 = vperm.xlu0 %123, %v75
      %v125 = vpop.permute.xlu0 %124
      %126 = vset.pattern.permute.xlu0 0
      %127 = vperm.xlu0 %126, %v76
      %v128 = vpop.permute.xlu0 %127
      %129 = vset.pattern.permute.xlu0 0
      %130 = vperm.xlu0 %129, %v77
      %v131 = vpop.permute.xlu0 %130
      %132 = vset.pattern.permute.xlu0 0
      %133 = vperm.xlu0 %132, %v78
      %v134 = vpop.permute.xlu0 %133
      %135 = vset.pattern.permute.xlu0 0
      %136 = vperm.xlu0 %135, %v79
      %v137 = vpop.permute.xlu0 %136
      %138 = vset.pattern.permute.xlu0 0
      %139 = vperm.xlu0 %138, %v80
      %v140 = vpop.permute.xlu0 %139
      %141 = vset.pattern.permute.xlu0 0
      %142 = vperm.xlu0 %141, %v81
      %v143 = vpop.permute.xlu0 %142
      %144 = vset.pattern.permute.xlu0 0
      %145 = vperm.xlu0 %144, %v82
      %v146 = vpop.permute.xlu0 %145
      %147 = vset.pattern.permute.xlu0 0
      %148 = vperm.xlu0 %147, %v83
      %v149 = vpop.permute.xlu0 %148
      %150 = vset.pattern.permute.xlu0 0
      %151 = vperm.xlu0 %150, %v84
      %v152 = vpop.permute.xlu0 %151
      %153 = vset.pattern.permute.xlu0 0
      %154 = vperm.xlu0 %153, %v85
      %v155 = vpop.permute.xlu0 %154
      %156 = vset.pattern.permute.xlu0 0
      %157 = vperm.xlu0 %156, %v86
      %v158 = vpop.permute.xlu0 %157
      %159 = vset.pattern.permute.xlu0 0
      %160 = vperm.xlu0 %159, %v87
      %v161 = vpop.permute.xlu0 %160
      %162 = vset.pattern.permute.xlu0 0
      %163 = vperm.xlu0 %162, %v88
      %v164 = vpop.permute.xlu0 %163
      %165 = vset.pattern.permute.xlu0 0
      %166 = vperm.xlu0 %165, %v89
      %v167 = vpop.permute.xlu0 %166
      %168 = vset.pattern.permute.xlu0 0
      %169 = vperm.xlu0 %168, %v90
      %v170 = vpop.permute.xlu0 %169
      %171 = vset.pattern.permute.xlu0 0
      %172 = vperm.xlu0 %171, %v91
      %v173 = vpop.permute.xlu0 %172
      %174 = vset.pattern.permute.xlu0 0
      %175 = vperm.xlu0 %174, %v92
      %v176 = vpop.permute.xlu0 %175
      %177 = vset.pattern.permute.xlu0 0
      %178 = vperm.xlu0 %177, %v93
      %v179 = vpop.permute.xlu0 %178
      %180 = vset.pattern.permute.xlu0 0
      %181 = vperm.xlu0 %180, %v94
      %v182 = vpop.permute.xlu0 %181
      %183 = vset.pattern.permute.xlu0 0
      %184 = vperm.xlu0 %183, %v95
      %v185 = vpop.permute.xlu0 %184
      %186 = vset.pattern.permute.xlu0 0
      %187 = vperm.xlu0 %186, %v96
      %v188 = vpop.permute.xlu0 %187
      %189 = vset.pattern.permute.xlu0 0
      %190 = vperm.xlu0 %189, %v97
      %v191 = vpop.permute.xlu0 %190
      %192 = vset.pattern.permute.xlu0 0
      %193 = vperm.xlu0 %192, %v98
      %v194 = vpop.permute.xlu0 %193
      %vm195 = vcmp.eq.s32.totalorder %v101, %v66
      %vm196 = vcmp.eq.s32.totalorder %v104, %v66
      %vm197 = vcmp.eq.s32.totalorder %v107, %v66
      %vm198 = vcmp.eq.s32.totalorder %v110, %v66
      %vm199 = vcmp.eq.s32.totalorder %v113, %v66
      %vm200 = vcmp.eq.s32.totalorder %v116, %v66
      %vm201 = vcmp.eq.s32.totalorder %v119, %v66
      %vm202 = vcmp.eq.s32.totalorder %v122, %v66
      %vm203 = vcmp.eq.s32.totalorder %v125, %v66
      %vm204 = vcmp.eq.s32.totalorder %v128, %v66
      %vm205 = vcmp.eq.s32.totalorder %v131, %v66
      %vm206 = vcmp.eq.s32.totalorder %v134, %v66
      %vm207 = vcmp.eq.s32.totalorder %v137, %v66
      %vm208 = vcmp.eq.s32.totalorder %v140, %v66
      %vm209 = vcmp.eq.s32.totalorder %v143, %v66
      %vm210 = vcmp.eq.s32.totalorder %v146, %v66
      %vm211 = vcmp.eq.s32.totalorder %v149, %v66
      %vm212 = vcmp.eq.s32.totalorder %v152, %v66
      %vm213 = vcmp.eq.s32.totalorder %v155, %v66
      %vm214 = vcmp.eq.s32.totalorder %v158, %v66
      %vm215 = vcmp.eq.s32.totalorder %v161, %v66
      %vm216 = vcmp.eq.s32.totalorder %v164, %v66
      %vm217 = vcmp.eq.s32.totalorder %v167, %v66
      %vm218 = vcmp.eq.s32.totalorder %v170, %v66
      %vm219 = vcmp.eq.s32.totalorder %v173, %v66
      %vm220 = vcmp.eq.s32.totalorder %v176, %v66
      %vm221 = vcmp.eq.s32.totalorder %v179, %v66
      %vm222 = vcmp.eq.s32.totalorder %v182, %v66
      %vm223 = vcmp.eq.s32.totalorder %v185, %v66
      %vm224 = vcmp.eq.s32.totalorder %v188, %v66
      %vm225 = vcmp.eq.s32.totalorder %v191, %v66
      %vm226 = vcmp.eq.s32.totalorder %v194, %v66
      %v227 = vsel %vm195, 1, 0
      %v228 = vsel %vm196, 1, 0
      %v229 = vsel %vm197, 1, 0
      %v230 = vsel %vm198, 1, 0
      %v231 = vsel %vm199, 1, 0
      %v232 = vsel %vm200, 1, 0
      %v233 = vsel %vm201, 1, 0
      %v234 = vsel %vm202, 1, 0
      %v235 = vsel %vm203, 1, 0
      %v236 = vsel %vm204, 1, 0
      %v237 = vsel %vm205, 1, 0
      %v238 = vsel %vm206, 1, 0
      %v239 = vsel %vm207, 1, 0
      %v240 = vsel %vm208, 1, 0
      %v241 = vsel %vm209, 1, 0
      %v242 = vsel %vm210, 1, 0
      %v243 = vsel %vm211, 1, 0
      %v244 = vsel %vm212, 1, 0
      %v245 = vsel %vm213, 1, 0
      %v246 = vsel %vm214, 1, 0
      %v247 = vsel %vm215, 1, 0
      %v248 = vsel %vm216, 1, 0
      %v249 = vsel %vm217, 1, 0
      %v250 = vsel %vm218, 1, 0
      %v251 = vsel %vm219, 1, 0
      %v252 = vsel %vm220, 1, 0
      %v253 = vsel %vm221, 1, 0
      %v254 = vsel %vm222, 1, 0
      %v255 = vsel %vm223, 1, 0
      %v256 = vsel %vm224, 1, 0
      %v257 = vsel %vm225, 1, 0
      %v258 = vsel %vm226, 1, 0
      %v259 = vcvt.s32.f32 %v227
      %v260 = vcvt.s32.f32 %v228
      %v261 = vcvt.s32.f32 %v229
      %v262 = vcvt.s32.f32 %v230
      %v263 = vcvt.s32.f32 %v231
      %v264 = vcvt.s32.f32 %v232
      %v265 = vcvt.s32.f32 %v233
      %v266 = vcvt.s32.f32 %v234
      %v267 = vcvt.s32.f32 %v235
      %v268 = vcvt.s32.f32 %v236
      %v269 = vcvt.s32.f32 %v237
      %v270 = vcvt.s32.f32 %v238
      %v271 = vcvt.s32.f32 %v239
      %v272 = vcvt.s32.f32 %v240
      %v273 = vcvt.s32.f32 %v241
      %v274 = vcvt.s32.f32 %v242
      %v275 = vcvt.s32.f32 %v243
      %v276 = vcvt.s32.f32 %v244
      %v277 = vcvt.s32.f32 %v245
      %v278 = vcvt.s32.f32 %v246
      %v279 = vcvt.s32.f32 %v247
      %v280 = vcvt.s32.f32 %v248
      %v281 = vcvt.s32.f32 %v249
      %v282 = vcvt.s32.f32 %v250
      %v283 = vcvt.s32.f32 %v251
      %v284 = vcvt.s32.f32 %v252
      %v285 = vcvt.s32.f32 %v253
      %v286 = vcvt.s32.f32 %v254
      %v287 = vcvt.s32.f32 %v255
      %v288 = vcvt.s32.f32 %v256
      %v289 = vcvt.s32.f32 %v257
      %v290 = vcvt.s32.f32 %v258
      %v291 = vpack.c.bf16 %v260, %v259
      %v292 = vpack.c.bf16 %v262, %v261
      %v293 = vpack.c.bf16 %v264, %v263
      %v294 = vpack.c.bf16 %v266, %v265
      %v295 = vpack.c.bf16 %v268, %v267
      %v296 = vpack.c.bf16 %v270, %v269
      %v297 = vpack.c.bf16 %v272, %v271
      %v298 = vpack.c.bf16 %v274, %v273
      %v299 = vpack.c.bf16 %v276, %v275
      %v300 = vpack.c.bf16 %v278, %v277
      %v301 = vpack.c.bf16 %v280, %v279
      %v302 = vpack.c.bf16 %v282, %v281
      %v303 = vpack.c.bf16 %v284, %v283
      %v304 = vpack.c.bf16 %v286, %v285
      %v305 = vpack.c.bf16 %v288, %v287
      %v306 = vpack.c.bf16 %v290, %v289
      %v307 = vld [vmem:[%s2] sm:$0xff]
      %v309 = vunpack.c.l.b16 %v307
      %v310 = vunpack.c.h.b16 %v307
      %v311 = vpack.c.b16 %v309, %v309
      %v312 = vpack.c.b16 %v310, %v310
      %315 = vmatprep.subr.bf16.mxu0 0
      %316 = vmatpush1.bf16.msra.mxu0 %v291
      %317 = vmatprep.subr.bf16.mxu0 0
      %318 = vmatpush1.bf16.msra.mxu0 %v292
      %319 = vmatprep.subr.bf16.mxu0 0
      %320 = vmatpush1.bf16.msra.mxu0 %v293
      %321 = vmatprep.subr.bf16.mxu0 0
      %322 = vmatpush1.bf16.msra.mxu0 %v294
      %323 = vmatprep.subr.bf16.mxu0 0
      %324 = vmatpush1.bf16.msra.mxu0 %v295
      %325 = vmatprep.subr.bf16.mxu0 0
      %326 = vmatpush1.bf16.msra.mxu0 %v296
      %327 = vmatprep.subr.bf16.mxu0 0
      %328 = vmatpush1.bf16.msra.mxu0 %v297
      %329 = vmatprep.subr.bf16.mxu0 0
      %330 = vmatpush1.bf16.msra.mxu0 %v298
      %331 = vmatprep.subr.bf16.mxu0 0
      %332 = vmatpush1.bf16.msra.mxu0 %v299
      %333 = vmatprep.subr.bf16.mxu0 0
      %334 = vmatpush1.bf16.msra.mxu0 %v300
      %335 = vmatprep.subr.bf16.mxu0 0
      %336 = vmatpush1.bf16.msra.mxu0 %v301
      %337 = vmatprep.subr.bf16.mxu0 0
      %338 = vmatpush1.bf16.msra.mxu0 %v302
      %339 = vmatprep.subr.bf16.mxu0 0
      %340 = vmatpush1.bf16.msra.mxu0 %v303
      %341 = vmatprep.subr.bf16.mxu0 0
      %342 = vmatpush1.bf16.msra.mxu0 %v304
      %343 = vmatprep.subr.bf16.mxu0 0
      %344 = vmatpush1.bf16.msra.mxu0 %v305
      %345 = vmatprep.subr.bf16.mxu0 0
      %346 = vmatpush1.bf16.msra.mxu0 %v306
      %347 = vmatprep.mubr.bf16.mxu0 %v312
      %348 = vmatmul.mubr.bf16.gmra.mrb[0].mxu0 %v311
      %v349 = vpop.f32.mrb[0].mxu0
      %v350 = vadd.f32 0.0, %v349
      %v351 = vpop.f32.mrb[0].mxu0
      %v352 = vpop.f32.mrb[0].mxu0
      %v353 = vpop.f32.mrb[0].mxu0
      %354 = vdwg.mxu0
      %v355 = vld [vmem:[#allocation2] sm:$0xff]
      %v356 = vpack.c.bf16 %v350, %v350
      %v357 = vld [vmem:[%s47] sm:$0xf]
      %v358 = vld [vmem:[%s47 + $0x4] sm:$0xf]
      %v359 = vld [vmem:[%s47 + $0x8] sm:$0xf]
      %v360 = vld [vmem:[%s47 + $0xc] sm:$0xf]
      %v361 = vld [vmem:[%s47 + $0x10] sm:$0xf]
      %v362 = vld [vmem:[%s47 + $0x14] sm:$0xf]
      %v363 = vld [vmem:[%s47 + $0x18] sm:$0xf]
      %v364 = vld [vmem:[%s47 + $0x1c] sm:$0xf]
      %v373 = vunpack.c.l.b16 %v357
      %v374 = vunpack.c.l.b16 %v358
      %v375 = vunpack.c.l.b16 %v359
      %v376 = vunpack.c.l.b16 %v360
      %v377 = vunpack.c.l.b16 %v361
      %v378 = vunpack.c.l.b16 %v362
      %v379 = vunpack.c.l.b16 %v363
      %v380 = vunpack.c.l.b16 %v364
      %v381 = vpack.c.b16 %v374, %v373
      %v382 = vpack.c.b16 %v376, %v375
      %v383 = vpack.c.b16 %v378, %v377
      %v384 = vpack.c.b16 %v380, %v379
      %vm389 = vcmask 523264
      %v391 = vsel %vm389, %v356, 0
      %393 = vmatprep.subr.bf16.mxu0 0
      %394 = vmatpush1.bf16.msra.mxu0 %v381
      %395 = vmatprep.subr.bf16.mxu0 0
      %396 = vmatpush1.bf16.msra.mxu0 %v382
      %397 = vmatprep.subr.bf16.mxu0 0
      %398 = vmatpush1.bf16.msra.mxu0 %v383
      %399 = vmatprep.subr.bf16.mxu0 0
      %400 = vmatpush1.bf16.msra.mxu0 %v384
      %401 = vmatprep.subr.bf16.mxu0 0
      %402 = vmatpush1.bf16.msra.mxu0 0
      %403 = vmatprep.subr.bf16.mxu0 0
      %404 = vmatpush1.bf16.msra.mxu0 0
      %405 = vmatprep.subr.bf16.mxu0 0
      %406 = vmatpush1.bf16.msra.mxu0 0
      %407 = vmatprep.subr.bf16.mxu0 0
      %408 = vmatpush1.bf16.msra.mxu0 0
      %409 = vmatprep.subr.bf16.mxu0 0
      %410 = vmatpush1.bf16.msra.mxu0 0
      %411 = vmatprep.subr.bf16.mxu0 0
      %412 = vmatpush1.bf16.msra.mxu0 0
      %413 = vmatprep.subr.bf16.mxu0 0
      %414 = vmatpush1.bf16.msra.mxu0 0
      %415 = vmatprep.subr.bf16.mxu0 0
      %416 = vmatpush1.bf16.msra.mxu0 0
      %417 = vmatprep.subr.bf16.mxu0 0
      %418 = vmatpush1.bf16.msra.mxu0 0
      %419 = vmatprep.subr.bf16.mxu0 0
      %420 = vmatpush1.bf16.msra.mxu0 0
      %421 = vmatprep.subr.bf16.mxu0 0
      %422 = vmatpush1.bf16.msra.mxu0 0
      %423 = vmatprep.subr.bf16.mxu0 0
      %424 = vmatpush1.bf16.msra.mxu0 0
      %425 = vmatprep.mubr.bf16.mxu0 0
      %426 = vmatmul.mubr.bf16.gmra.mrb[0].mxu0 %v391
      %v427 = vpop.f32.mrb[0].mxu0
      %v428 = vadd.f32 0.0, %v427
      %v429 = vpop.f32.mrb[0].mxu0
      %v430 = vpop.f32.mrb[0].mxu0
      %v431 = vpop.f32.mrb[0].mxu0
      %432 = vdwg.mxu0
      %v433 = vadd.f32 %v355, %v428
      %434 = vst [vmem:[#allocation2] sm:$0xff] %v433
    $region33: #{tpu_custom_call.1} parent=1 // pred_fallthru
      _
    // Predicated region
    $region34: #{tpu_custom_call.1} parent=1 // pred_check
      %p435 = pneg %p51
    $region35: #{tpu_custom_call.1} parent=1 // pred_check_branch
      %437 = sbr.rel (%p435) target = $region37
    $region36: #{tpu_custom_call.1} parent=1 // pred_region
      %v438 = vld [vmem:[#allocation2] sm:$0xff]
      %v439 = vmax.f32 %v438, 0.0
      %v440 = vld [vmem:[%s4] sm:$0xff]
      %442 = vset.pattern.permute.xlu0 0
      %443 = vperm.xlu0 %442, %v440
      %v444 = vpop.permute.xlu0 %443
      %v446 = vmul.f32 %v439, %v444
      %v447 = vpack.c.bf16 %v446, %v446
      %v448 = vld [vmem:[%s6] sm:$0xf]
      %v449 = vld [vmem:[%s6 + $0x4] sm:$0xf]
      %v450 = vld [vmem:[%s6 + $0x8] sm:$0xf]
      %v451 = vld [vmem:[%s6 + $0xc] sm:$0xf]
      %v452 = vld [vmem:[%s6 + $0x10] sm:$0xf]
      %v453 = vld [vmem:[%s6 + $0x14] sm:$0xf]
      %v454 = vld [vmem:[%s6 + $0x18] sm:$0xf]
      %v455 = vld [vmem:[%s6 + $0x1c] sm:$0xf]
      %v456 = vld [vmem:[%s6 + $0x20] sm:$0xf]
      %v457 = vld [vmem:[%s6 + $0x24] sm:$0xf]
      %v458 = vld [vmem:[%s6 + $0x28] sm:$0xf]
      %v459 = vld [vmem:[%s6 + $0x2c] sm:$0xf]
      %v460 = vld [vmem:[%s6 + $0x30] sm:$0xf]
      %v461 = vld [vmem:[%s6 + $0x34] sm:$0xf]
      %v462 = vld [vmem:[%s6 + $0x38] sm:$0xf]
      %v463 = vld [vmem:[%s6 + $0x3c] sm:$0xf]
      %v464 = vld [vmem:[%s7] sm:$0x1]
      %v466 = vlaneseq
      %v467 = vshrl.u32 %v466, 7
      %v468 = vsub.s32 0, %v467
      %v469 = vrot.slane %v464, %v468
      %v487 = vunpack.c.l.b16 %v448
      %v488 = vunpack.c.l.b16 %v449
      %v489 = vunpack.c.l.b16 %v450
      %v490 = vunpack.c.l.b16 %v451
      %v491 = vunpack.c.l.b16 %v452
      %v492 = vunpack.c.l.b16 %v453
      %v493 = vunpack.c.l.b16 %v454
      %v494 = vunpack.c.l.b16 %v455
      %v495 = vunpack.c.l.b16 %v456
      %v496 = vunpack.c.l.b16 %v457
      %v497 = vunpack.c.l.b16 %v458
      %v498 = vunpack.c.l.b16 %v459
      %v499 = vunpack.c.l.b16 %v460
      %v500 = vunpack.c.l.b16 %v461
      %v501 = vunpack.c.l.b16 %v462
      %v502 = vunpack.c.l.b16 %v463
      %v503 = vpack.c.b16 %v488, %v487
      %v504 = vpack.c.b16 %v490, %v489
      %v505 = vpack.c.b16 %v492, %v491
      %v506 = vpack.c.b16 %v494, %v493
      %v507 = vpack.c.b16 %v496, %v495
      %v508 = vpack.c.b16 %v498, %v497
      %v509 = vpack.c.b16 %v500, %v499
      %v510 = vpack.c.b16 %v502, %v501
      %519 = vmatprep.subr.bf16.mxu0 0
      %520 = vmatpush1.bf16.msra.mxu0 %v503
      %521 = vmatprep.subr.bf16.mxu0 0
      %522 = vmatpush1.bf16.msra.mxu0 %v504
      %523 = vmatprep.subr.bf16.mxu0 0
      %524 = vmatpush1.bf16.msra.mxu0 %v505
      %525 = vmatprep.subr.bf16.mxu0 0
      %526 = vmatpush1.bf16.msra.mxu0 %v506
      %527 = vmatprep.subr.bf16.mxu0 0
      %528 = vmatpush1.bf16.msra.mxu0 %v507
      %529 = vmatprep.subr.bf16.mxu0 0
      %530 = vmatpush1.bf16.msra.mxu0 %v508
      %531 = vmatprep.subr.bf16.mxu0 0
      %532 = vmatpush1.bf16.msra.mxu0 %v509
      %533 = vmatprep.subr.bf16.mxu0 0
      %534 = vmatpush1.bf16.msra.mxu0 %v510
      %535 = vmatprep.subr.bf16.mxu0 0
      %536 = vmatpush1.bf16.msra.mxu0 0
      %537 = vmatprep.subr.bf16.mxu0 0
      %538 = vmatpush1.bf16.msra.mxu0 0
      %539 = vmatprep.subr.bf16.mxu0 0
      %540 = vmatpush1.bf16.msra.mxu0 0
      %541 = vmatprep.subr.bf16.mxu0 0
      %542 = vmatpush1.bf16.msra.mxu0 0
      %543 = vmatprep.subr.bf16.mxu0 0
      %544 = vmatpush1.bf16.msra.mxu0 0
      %545 = vmatprep.subr.bf16.mxu0 0
      %546 = vmatpush1.bf16.msra.mxu0 0
      %547 = vmatprep.subr.bf16.mxu0 0
      %548 = vmatpush1.bf16.msra.mxu0 0
      %549 = vmatprep.subr.bf16.mxu0 0
      %550 = vmatpush1.bf16.msra.mxu0 0
      %551 = vmatprep.mubr.bf16.mxu0 0
      %552 = vmatmul.mubr.bf16.gmra.mrb[0].mxu0 %v447
      %v553 = vpop.f32.mrb[0].mxu0
      %v554 = vadd.f32 %v469, %v553
      %v555 = vpop.f32.mrb[0].mxu0
      %v556 = vpop.f32.mrb[0].mxu0
      %v557 = vpop.f32.mrb[0].mxu0
      %558 = vdwg.mxu0
      %559 = vst [vmem:[#allocation6] sm:$0xff] %v554
    $region37: #{tpu_custom_call.1} parent=1 // pred_fallthru
      _
    // Predicated region
    $region38: #{tpu_custom_call.1} parent=1 // pred_check
      _
    $region39: #{tpu_custom_call.1} parent=1 // pred_check_branch
      %561 = sbr.rel (0) target = $region41
    $region40: #{tpu_custom_call.1} parent=1 // pred_region
      %s563 = ssub.s32 128, 128
      %564 = vsyncadd [#allocation7], %s563
      %s566 = sshll.u32 [#allocation6], 4
      %s567 = int_to_ptr.vmem [resolvable:$true] %s566
      %569 = dma.vmem_to_hbm [thread:$0]  %s567, 128, %s8, [#allocation7]
    $region41: #{tpu_custom_call.1} parent=1 // pred_fallthru
      _
    // Predicated region
    $region42: #{tpu_custom_call.1} parent=1 // pred_check
      _
    $region43: #{tpu_custom_call.1} parent=1 // pred_check_branch
      %571 = sbr.rel (0) target = $region45
    $region44: #{tpu_custom_call.1} parent=1 // pred_region
      %572 = dma.done [#allocation7], 128
    $region45: #{tpu_custom_call.1} parent=1 // pred_fallthru
      _
    %573 = vsyncpa [#allocation7], 1

</llo_original>
